<compile_context>
chip_gen: v7x
topology: tpu7x:2x2x1
jax: 0.10.0
libtpu: 0.0.40
codegen_flags: <defaults>
</compile_context>

<pallas_src>
import functools

import jax
import jax.numpy as jnp
from jax.experimental import pallas as pl
from jax.experimental.pallas import tpu as pltpu

_EPS = 1e-07

_MAX_TILE_ROWS = 256           # sublane-axis tile cap (multiple of 8)
_MAX_TILE_COLS = 2048          # lane-axis tile cap (multiple of 128) ~2 MiB f32
_VMEM_LIMIT_BYTES = 40 * 1024 * 1024   # explicit; safe on v5e/v6e/v7x


def _pick_tile(dim, unit, cap):
    """Largest TPU-friendly tile for `dim`.

    Returns the full dim when it is small or already aligned (block == full dim
    is always legal), otherwise a multiple of `unit` capped at `cap`; ragged
    edge tiles are handled in-kernel.
    """
    if dim <= unit:
        return dim
    if dim % unit == 0 and dim <= cap:
        return dim
    return min(cap, (dim // unit) * unit)


# -----------------------------------------------------------------------------
# Kernels
# -----------------------------------------------------------------------------
def _bce_sum_kernel(pred_ref, target_ref, out_ref, acc_ref, *,
                    R, L, tile_rows, tile_cols, lane_w,
                    need_row_mask, need_col_mask):
    """Accumulates un-weighted BCE into a full-tile scratch across the column
    grid axis; on the last column step folds lanes into a (tile_rows, lane_w)
    partial-sum block for this row block."""
    j = pl.program_id(1)

    @pl.when(j == 0)
    def _():
        acc_ref[...] = jnp.zeros_like(acc_ref)

    p = jnp.clip(pred_ref[...].astype(jnp.float32), _EPS, 1.0 - _EPS)
    t = target_ref[...].astype(jnp.float32)
    bce = -(t * jnp.log(p) + (1.0 - t) * jnp.log(1.0 - p))

    # Mask ragged edge tiles (only traced when edges actually exist).  Use
    # jnp.where (not multiply) so garbage/NaN in out-of-bounds reads never
    # reaches the accumulator.
    if need_row_mask or need_col_mask:
        valid = None
        if need_row_mask:
            rows = (pl.program_id(0) * tile_rows +
                    jax.lax.broadcasted_iota(jnp.int32,
                                             (tile_rows, tile_cols), 0))
            valid = rows < R
        if need_col_mask:
            cols = (j * tile_cols +
                    jax.lax.broadcasted_iota(jnp.int32,
                                             (tile_rows, tile_cols), 1))
            cmask = cols < L
            valid = cmask if valid is None else (valid & cmask)
        bce = jnp.where(valid, bce, 0.0)

    acc_ref[...] += bce          # pure VPU, hidden under input DMA

    @pl.when(j == pl.num_programs(1) - 1)
    def _():
        acc = acc_ref[...]
        # Fold lane groups into one lane-dense (tile_rows, lane_w) partial with
        # static 128-aligned slices + VPU adds (once per row block).
        partial = acc[:, 0:lane_w]
        for c in range(1, tile_cols // lane_w):
            partial = partial + acc[:, c * lane_w:(c + 1) * lane_w]
        out_ref[0, :, :] = partial


def _bce_map_kernel(*refs, has_weight):
    """Writes weight * BCE(pred, target) element-wise (float32)."""
    if has_weight:
        pred_ref, target_ref, w_ref, out_ref = refs
    else:
        pred_ref, target_ref, out_ref = refs
    p = jnp.clip(pred_ref[...].astype(jnp.float32), _EPS, 1.0 - _EPS)
    t = target_ref[...].astype(jnp.float32)
    bce = -(t * jnp.log(p) + (1.0 - t) * jnp.log(1.0 - p))
    if has_weight:
        bce = bce * w_ref[...]                   # (tile_rows, 1) broadcast
    out_ref[...] = bce


# -----------------------------------------------------------------------------
# Wrapper
# -----------------------------------------------------------------------------
def mask_cross_entropy_loss(pred, target, weight=None, reduction="mean"):
    """Pallas implementation of MaskCrossEntropyLoss.forward.

    pred, target: (N, C, H, W) arrays (any float dtype; computed in float32).
    weight: optional (C,) per-channel weight.
    reduction: 'mean' | 'sum' | anything else -> element-wise map ('none').
    """
    N, C, H, W = pred.shape
    R, L = N * C, H * W

    # Free views — no dtype cast, no padding here.
    pred2 = pred.reshape(R, L)
    target2 = target.reshape(R, L)

    tile_rows = _pick_tile(R, 8, _MAX_TILE_ROWS)
    tile_cols = _pick_tile(L, 128, _MAX_TILE_COLS)
    n_row_blocks = pl.cdiv(R, tile_rows)
    n_col_blocks = pl.cdiv(L, tile_cols)
    grid = (n_row_blocks, n_col_blocks)

    tile_spec = pl.BlockSpec((tile_rows, tile_cols), lambda i, j: (i, j))

    if reduction in ("mean", "sum"):
        lane_w = min(tile_cols, 128)
        kernel = functools.partial(
            _bce_sum_kernel,
            R=R, L=L, tile_rows=tile_rows, tile_cols=tile_cols, lane_w=lane_w,
            need_row_mask=(R % tile_rows != 0),
            need_col_mask=(L % tile_cols != 0))

        partials = pl.pallas_call(
            kernel,
            out_shape=jax.ShapeDtypeStruct(
                (n_row_blocks, tile_rows, lane_w), jnp.float32),
            grid_spec=pltpu.PrefetchScalarGridSpec(
                num_scalar_prefetch=0,
                grid=grid,
                in_specs=[tile_spec, tile_spec],
                out_specs=pl.BlockSpec((1, tile_rows, lane_w),
                                       lambda i, j: (i, 0, 0)),
                scratch_shapes=[pltpu.VMEM((tile_rows, tile_cols),
                                           jnp.float32)],
            ),
            compiler_params=pltpu.CompilerParams(
                dimension_semantics=("parallel", "arbitrary"),
                vmem_limit_bytes=_VMEM_LIMIT_BYTES),
        )(pred2, target2)

        if weight is not None:
            # Apply the per-channel weight to per-row sums in the wrapper
            # (tiny: R x 128 elements) — no weight DMA in the kernel.
            row_sums = partials.reshape(
                n_row_blocks * tile_rows, lane_w).sum(axis=-1)[:R]
            w_row = jnp.tile(weight.astype(jnp.float32).reshape(-1), N)
            total = jnp.sum(row_sums * w_row)
        else:
            total = jnp.sum(partials)

        if reduction == "mean":
            return total / jnp.float32(N * C * H * W)
        return total

    # reduction == 'none': element-wise float32 BCE map, back in NCHW.
    has_weight = weight is not None
    kernel = functools.partial(_bce_map_kernel, has_weight=has_weight)
    in_specs = [tile_spec, tile_spec]
    args = [pred2, target2]
    if has_weight:
        w_row = jnp.tile(weight.astype(jnp.float32).reshape(-1),
                         N).reshape(R, 1)
        in_specs.append(pl.BlockSpec((tile_rows, 1), lambda i, j: (i, 0)))
        args.append(w_row)

    bce = pl.pallas_call(
        kernel,
        out_shape=jax.ShapeDtypeStruct((R, L), jnp.float32),
        grid_spec=pltpu.PrefetchScalarGridSpec(
            num_scalar_prefetch=0,
            grid=grid,
            in_specs=in_specs,
            out_specs=tile_spec,
        ),
        compiler_params=pltpu.CompilerParams(
            dimension_semantics=("parallel", "parallel"),
            vmem_limit_bytes=_VMEM_LIMIT_BYTES),
    )(*args)
    return bce.reshape(N, C, H, W)


# -----------------------------------------------------------------------------
# Pure-JAX reference (mirrors the PyTorch forward exactly)
# -----------------------------------------------------------------------------
def _reference(pred, target, weight=None, reduction="mean"):
    pred = jnp.clip(pred.astype(jnp.float32), _EPS, 1.0 - _EPS)
    target = target.astype(jnp.float32)
    bce = -(target * jnp.log(pred) + (1.0 - target) * jnp.log(1.0 - pred))
    if weight is not None:
        bce = bce * weight.reshape(1, -1, 1, 1)
    if reduction == "mean":
        return jnp.mean(bce)
    if reduction == "sum":
        return jnp.sum(bce)
    return bce


if __name__ == "__main__":
    key = jax.random.PRNGKey(0)
    k1, k2 = jax.random.split(key)

    N, C, H, W = 2, 4, 16, 16
    pred = jax.random.uniform(k1, (N, C, H, W), jnp.float32,
                              minval=0.01, maxval=0.99)
    target = (jax.random.uniform(k2, (N, C, H, W)) > 0.5).astype(jnp.float32)
    weight = jnp.linspace(0.5, 1.5, C).astype(jnp.float32)

    ok = True
    for reduction in ("mean", "sum", "none"):
        out = mask_cross_entropy_loss(pred, target, weight=weight,
                                      reduction=reduction)
        out = jax.block_until_ready(out)
        ref = _reference(pred, target, weight=weight, reduction=reduction)
        if not jnp.allclose(out, ref, rtol=1e-5, atol=1e-5):
            ok = False

    # Default configuration (weight=None, reduction='mean').
    out = jax.block_until_ready(mask_cross_entropy_loss(pred, target))
    ref = _reference(pred, target)
    ok = ok and bool(jnp.allclose(out, ref, rtol=1e-5, atol=1e-5))

    # Also exercise weight=None with reduction='sum' and 'none'.
    for reduction in ("sum", "none"):
        out = jax.block_until_ready(
            mask_cross_entropy_loss(pred, target, reduction=reduction))
        ref = _reference(pred, target, reduction=reduction)
        ok = ok and bool(jnp.allclose(out, ref, rtol=1e-5, atol=1e-5))

    if ok:
        print("KERNEL_OK")
</pallas_src>

<mosaic_0001>
module attributes {stable_mosaic.version = 11 : i64} {
  func.func @_bce_sum_kernel(%arg0: i32, %arg1: i32, %arg2: memref<8x256xf32, #tpu.memory_space<vmem>>, %arg3: memref<8x256xf32, #tpu.memory_space<vmem>>, %arg4: memref<1x8x128xf32, #tpu.memory_space<vmem>>, %arg5: memref<8x256xf32, #tpu.memory_space<vmem>>) attributes {dimension_semantics = [#tpu.dimension_semantics<parallel>, #tpu.dimension_semantics<arbitrary>], iteration_bounds = array<i64: 1, 1>, scalar_prefetch = 0 : i64, scratch_operands = 1 : i64, tpu.core_type = #tpu.core_type<tc>, window_params = [{transform_indices = @transform_0, window_bounds = array<i64: 8, 256>}, {transform_indices = @transform_1, window_bounds = array<i64: 8, 256>}, {transform_indices = @transform_2, window_bounds = array<i64: 1, 8, 128>}]} {
    %c0_i32 = arith.constant 0 : i32
    %0 = arith.cmpi eq, %arg1, %c0_i32 : i32
    %1 = arith.extui %0 : i1 to i32
    %c0_i32_0 = arith.constant 0 : i32
    %2 = arith.cmpi ne, %1, %c0_i32_0 : i32
    scf.if %2 {
      %cst_14 = arith.constant 0.000000e+00 : f32
      %26 = vector.broadcast %cst_14 : f32 to vector<8x256xf32>
      %c0_15 = arith.constant 0 : index
      %c0_16 = arith.constant 0 : index
      %27 = vector.load %arg5[%c0_15, %c0_16] : memref<8x256xf32, #tpu.memory_space<vmem>>, vector<8x256xf32>
      tpu.vector_store %arg5[%c0_15, %c0_16], %26 {strides = array<i32>} : memref<8x256xf32, #tpu.memory_space<vmem>>, vector<8x256xf32>,
    } else {
    }
    %c0 = arith.constant 0 : index
    %c0_1 = arith.constant 0 : index
    %3 = vector.load %arg2[%c0, %c0_1] : memref<8x256xf32, #tpu.memory_space<vmem>>, vector<8x256xf32>
    %cst = arith.constant 1.000000e-07 : f32
    %cst_2 = arith.constant 0.99999988 : f32
    %4 = vector.broadcast %cst : f32 to vector<8x256xf32>
    %5 = arith.maximumf %4, %3 : vector<8x256xf32>
    %6 = vector.broadcast %cst_2 : f32 to vector<8x256xf32>
    %7 = arith.minimumf %6, %5 : vector<8x256xf32>
    %c0_3 = arith.constant 0 : index
    %c0_4 = arith.constant 0 : index
    %8 = vector.load %arg3[%c0_3, %c0_4] : memref<8x256xf32, #tpu.memory_space<vmem>>, vector<8x256xf32>
    %9 = math.log %7 : vector<8x256xf32>
    %10 = arith.mulf %8, %9 : vector<8x256xf32>
    %cst_5 = arith.constant 1.000000e+00 : f32
    %11 = vector.broadcast %cst_5 : f32 to vector<8x256xf32>
    %12 = arith.subf %11, %8 : vector<8x256xf32>
    %cst_6 = arith.constant 1.000000e+00 : f32
    %13 = vector.broadcast %cst_6 : f32 to vector<8x256xf32>
    %14 = arith.subf %13, %7 : vector<8x256xf32>
    %15 = math.log %14 : vector<8x256xf32>
    %16 = arith.mulf %12, %15 : vector<8x256xf32>
    %17 = arith.addf %10, %16 : vector<8x256xf32>
    %cst_7 = arith.constant 0.000000e+00 : f32
    %18 = vector.broadcast %cst_7 : f32 to vector<8x256xf32>
    %19 = arith.subf %18, %17 : vector<8x256xf32>
    %c0_8 = arith.constant 0 : index
    %c0_9 = arith.constant 0 : index
    %20 = vector.load %arg5[%c0_8, %c0_9] : memref<8x256xf32, #tpu.memory_space<vmem>>, vector<8x256xf32>
    %21 = arith.addf %20, %19 : vector<8x256xf32>
    %c0_10 = arith.constant 0 : index
    %c0_11 = arith.constant 0 : index
    %22 = vector.load %arg5[%c0_10, %c0_11] : memref<8x256xf32, #tpu.memory_space<vmem>>, vector<8x256xf32>
    tpu.vector_store %arg5[%c0_10, %c0_11], %21 {strides = array<i32>} : memref<8x256xf32, #tpu.memory_space<vmem>>, vector<8x256xf32>,
    %c0_i32_12 = arith.constant 0 : i32
    %23 = arith.cmpi eq, %arg1, %c0_i32_12 : i32
    %24 = arith.extui %23 : i1 to i32
    %c0_i32_13 = arith.constant 0 : i32
    %25 = arith.cmpi ne, %24, %c0_i32_13 : i32
    scf.if %25 {
      %c0_14 = arith.constant 0 : index
      %c0_15 = arith.constant 0 : index
      %26 = vector.load %arg5[%c0_14, %c0_15] : memref<8x256xf32, #tpu.memory_space<vmem>>, vector<8x256xf32>
      %27 = vector.extract_strided_slice %26 {offsets = [0, 0], sizes = [8, 128], strides = [1, 1]} : vector<8x256xf32> to vector<8x128xf32>
      %28 = vector.extract_strided_slice %26 {offsets = [0, 128], sizes = [8, 128], strides = [1, 1]} : vector<8x256xf32> to vector<8x128xf32>
      %29 = arith.addf %27, %28 : vector<8x128xf32>
      %c0_16 = arith.constant 0 : index
      %c0_17 = arith.constant 0 : index
      %c0_18 = arith.constant 0 : index
      %30 = vector.load %arg4[%c0_16, %c0_17, %c0_18] : memref<1x8x128xf32, #tpu.memory_space<vmem>>, vector<1x8x128xf32>
      %31 = vector.shape_cast %30 : vector<1x8x128xf32> to vector<8x128xf32>
      %32 = vector.shape_cast %29 : vector<8x128xf32> to vector<1x8x128xf32>
      tpu.vector_store %arg4[%c0_16, %c0_17, %c0_18], %32 {strides = array<i32>} : memref<1x8x128xf32, #tpu.memory_space<vmem>>, vector<1x8x128xf32>,
    } else {
    }
    return
  }
  func.func @transform_0(%arg0: i32, %arg1: i32) -> (i32, i32) {
    %c0_i32 = arith.constant 0 : i32
    return %arg0, %arg1 : i32, i32
  }
  func.func @transform_1(%arg0: i32, %arg1: i32) -> (i32, i32) {
    %c0_i32 = arith.constant 0 : i32
    return %arg0, %arg1 : i32, i32
  }
  func.func @transform_2(%arg0: i32, %arg1: i32) -> (i32, i32, i32) {
    %c0_i32 = arith.constant 0 : i32
    %c0_i32_0 = arith.constant 0 : i32
    %c0_i32_1 = arith.constant 0 : i32
    return %arg0, %c0_i32, %c0_i32_0 : i32, i32, i32
  }
}

</mosaic_0001>

<llo_original>
// kernel: tpu_custom_call.1
$region0: #{tpu_custom_call.1}
  #allocation0 [shape = 'u32[]', space=smem, size = 0x4, offset = 0x4, fixed_abs, tag = 'smem constant byte address 0x4 - core index']
  #allocation1 [shape = 'u32[144,128]{1,0:T(1,128)}', space=vmem, size = 0x12000, scoped, tag = 'internal scratch']
  #allocation2 [shape = 'f32[8,256]{1,0:T(8,128)}', space=vmem, size = 0x2000, scoped, tag = 'scratch operand']
  %s0 = inlined_call_operand.hbm [shape: f32[8,256], index: 0, kind: input, shape index: {}]
  %s1 = inlined_call_operand.hbm [shape: f32[8,256], index: 1, kind: input, shape index: {}]
  %s2 = inlined_call_operand.hbm [shape: f32[1,8,128], index: 2, kind: output, shape index: {}]
  %s3 = sld [smem:[#allocation0]]
  $region34: #{tpu_custom_call.1} parent=0
    _
  %s5 = ssub.s32 1, %s3
  %s6 = scalar_select 0, %s5, %s3
  $region1: #{tpu_custom_call.1} parent=0
    #allocation3 [shape = 'u8[8192]{0}', space=vmem, size = 0x2000, scoped, tag = 'input window, operand 0, single buffered']
    #allocation4 [shape = 's32[1]{0}', space=sflag, size = 0x4, scoped, tag = 'scoped memory for tpu_custom_call.1']
    #allocation5 [shape = 's32[1]{0}', space=sflag, size = 0x4, scoped, tag = 'scoped memory for tpu_custom_call.1']
    #allocation6 [shape = 'u8[8192]{0}', space=vmem, size = 0x2000, scoped, tag = 'input window, operand 1, single buffered']
    #allocation7 [shape = 's32[1]{0}', space=sflag, size = 0x4, scoped, tag = 'scoped memory for tpu_custom_call.1']
    #allocation8 [shape = 'u8[4096]{0}', space=vmem, size = 0x1000, scoped, tag = 'output window, operand 0, single buffered']
    %7 = vsyncpa [#allocation4], 0
    %8 = vsyncpa [#allocation7], 0
    %9 = vsyncpa [#allocation5], 0
    // Predicated region
    $region2: #{tpu_custom_call.1} parent=1 // pred_check
      _
    $region3: #{tpu_custom_call.1} parent=1 // pred_check_branch
      %11 = sbr.rel (0) target = $region5
    $region4: #{tpu_custom_call.1} parent=1 // pred_region
      %s13 = ssub.s32 256, 256
      %14 = vsyncadd [#allocation4], %s13
      %s16 = sshll.u32 [#allocation3], 4
      %s17 = int_to_ptr.vmem [resolvable:$true] %s16
      %19 = dma.hbm_to_vmem [thread:$0]  %s0, 256, %s17, [#allocation4]
    $region5: #{tpu_custom_call.1} parent=1 // pred_fallthru
      _
    // Predicated region
    $region6: #{tpu_custom_call.1} parent=1 // pred_check
      _
    $region7: #{tpu_custom_call.1} parent=1 // pred_check_branch
      %21 = sbr.rel (0) target = $region9
    $region8: #{tpu_custom_call.1} parent=1 // pred_region
      %s23 = ssub.s32 256, 256
      %24 = vsyncadd [#allocation7], %s23
      %s26 = sshll.u32 [#allocation6], 4
      %s27 = int_to_ptr.vmem [resolvable:$true] %s26
      %29 = dma.hbm_to_vmem [thread:$0]  %s1, 256, %s27, [#allocation7]
    $region9: #{tpu_custom_call.1} parent=1 // pred_fallthru
      _
    // Predicated region
    $region10: #{tpu_custom_call.1} parent=1 // pred_check
      _
    $region11: #{tpu_custom_call.1} parent=1 // pred_check_branch
      %31 = sbr.rel (0) target = $region13
    $region12: #{tpu_custom_call.1} parent=1 // pred_region
      %32 = dma.done [#allocation4], 256
    $region13: #{tpu_custom_call.1} parent=1 // pred_fallthru
      _
    // Predicated region
    $region14: #{tpu_custom_call.1} parent=1 // pred_check
      _
    $region15: #{tpu_custom_call.1} parent=1 // pred_check_branch
      %34 = sbr.rel (0) target = $region17
    $region16: #{tpu_custom_call.1} parent=1 // pred_region
      %35 = dma.done [#allocation7], 256
    $region17: #{tpu_custom_call.1} parent=1 // pred_fallthru
      _
    %p36 = scmp.eq.s32.totalorder 0, 0
    // Predicated region
    $region18: #{tpu_custom_call.1} parent=1 // pred_check
      %p37 = pneg %p36
    $region19: #{tpu_custom_call.1} parent=1 // pred_check_branch
      %39 = sbr.rel (%p37) target = $region21
    $region20: #{tpu_custom_call.1} parent=1 // pred_region
      %40 = vst [vmem:[#allocation2] sm:$0xff] 0.0
      %41 = vst [vmem:[#allocation2 + $0x8] sm:$0xff] 0.0
    $region21: #{tpu_custom_call.1} parent=1 // pred_fallthru
      _
    %v42 = vld [vmem:[#allocation3] sm:$0xff]
    %v43 = vld [vmem:[#allocation3 + $0x8] sm:$0xff]
    %v44 = vmax.f32 %v42, 1e-07
    %v45 = vmax.f32 %v43, 1e-07
    %v46 = vmin.f32 %v44, 0.9999999
    %v47 = vmin.f32 %v45, 0.9999999
    %v48 = vld [vmem:[#allocation6] sm:$0xff]
    %v49 = vld [vmem:[#allocation6 + $0x8] sm:$0xff]
    %v50 = vlog2.pop %v46
    %v51 = vmul.f32 %v50, 0.6931472
    %v52 = vlog2.pop %v47
    %v53 = vmul.f32 %v52, 0.6931472
    %v54 = vmul.f32 %v48, %v51
    %v55 = vmul.f32 %v49, %v53
    %v56 = vsub.f32 1.0, %v48
    %v57 = vsub.f32 1.0, %v49
    %v58 = vsub.f32 1.0, %v46
    %v59 = vsub.f32 1.0, %v47
    %v60 = vlog2.pop %v58
    %v61 = vmul.f32 %v60, 0.6931472
    %v62 = vlog2.pop %v59
    %v63 = vmul.f32 %v62, 0.6931472
    %v64 = vmul.f32 %v56, %v61
    %v65 = vmul.f32 %v57, %v63
    %v66 = vadd.f32 %v54, %v64
    %v67 = vadd.f32 %v55, %v65
    %v68 = vsub.f32 0.0, %v66
    %v69 = vsub.f32 0.0, %v67
    %v70 = vld [vmem:[#allocation2] sm:$0xff]
    %v71 = vld [vmem:[#allocation2 + $0x8] sm:$0xff]
    %v72 = vadd.f32 %v70, %v68
    %v73 = vadd.f32 %v71, %v69
    %74 = vst [vmem:[#allocation2] sm:$0xff] %v72
    %75 = vst [vmem:[#allocation2 + $0x8] sm:$0xff] %v73
    // Predicated region
    $region22: #{tpu_custom_call.1} parent=1 // pred_check
      %p76 = pneg %p36
    $region23: #{tpu_custom_call.1} parent=1 // pred_check_branch
      %78 = sbr.rel (%p76) target = $region25
    $region24: #{tpu_custom_call.1} parent=1 // pred_region
      %v79 = vld [vmem:[#allocation2] sm:$0xff]
      %v80 = vld [vmem:[#allocation2 + $0x8] sm:$0xff]
      %v81 = vadd.f32 %v79, %v80
      %82 = vst [vmem:[#allocation8] sm:$0xff] %v81
    $region25: #{tpu_custom_call.1} parent=1 // pred_fallthru
      _
    // Predicated region
    $region26: #{tpu_custom_call.1} parent=1 // pred_check
      _
    $region27: #{tpu_custom_call.1} parent=1 // pred_check_branch
      %84 = sbr.rel (0) target = $region29
    $region28: #{tpu_custom_call.1} parent=1 // pred_region
      %s86 = ssub.s32 128, 128
      %87 = vsyncadd [#allocation5], %s86
      %s89 = sshll.u32 [#allocation8], 4
      %s90 = int_to_ptr.vmem [resolvable:$true] %s89
      %92 = dma.vmem_to_hbm [thread:$0]  %s90, 128, %s2, [#allocation5]
    $region29: #{tpu_custom_call.1} parent=1 // pred_fallthru
      _
    // Predicated region
    $region30: #{tpu_custom_call.1} parent=1 // pred_check
      _
    $region31: #{tpu_custom_call.1} parent=1 // pred_check_branch
      %94 = sbr.rel (0) target = $region33
    $region32: #{tpu_custom_call.1} parent=1 // pred_region
      %95 = dma.done [#allocation5], 128
    $region33: #{tpu_custom_call.1} parent=1 // pred_fallthru
      _
    %96 = vsyncpa [#allocation4], 1
    %97 = vsyncpa [#allocation7], 1
    %98 = vsyncpa [#allocation5], 1

</llo_original>
